<compile_context>
chip_gen: v7x
topology: tpu7x:2x2x1
jax: 0.10.0
libtpu: 0.0.40
codegen_flags: <defaults>
</compile_context>

<pallas_src>
import math

import jax
import jax.numpy as jnp
from jax.experimental import pallas as pl
from jax.experimental.pallas import tpu as pltpu

_INV_SQRT2 = 1.0 / math.sqrt(2.0)


def _gelu_exact(h):
    # torch.nn.GELU default: 0.5 * x * (1 + erf(x / sqrt(2))).
    return 0.5 * h * (1.0 + jax.lax.erf(h * _INV_SQRT2))


def _round_up(x, m):
    return ((x + m - 1) // m) * m


def _sublane_multiple(dtype):
    """Minimum sublane tile for a dtype: 8 (4B), 16 (2B), 32 (1B)."""
    itemsize = jnp.dtype(dtype).itemsize
    return max(8, 8 * (4 // max(itemsize, 1)))


def _chunk_width(th):
    """Sub-chunk of the hidden tile processed per fc1/GELU/fc2 step."""
    for c in (256, 128):
        if th % c == 0 and th > c:
            return c
    return th


def _tpu_vmem_and_cores():
    """Best-effort generation query; safe defaults if unavailable."""
    vmem = 128 << 20
    cores = 1
    try:
        info = pltpu.get_tpu_info()
        for name in ("vmem_capacity_bytes", "vmem_size_bytes", "vmem_bytes"):
            v = getattr(info, name, None)
            if v:
                vmem = int(v)
                break
        for name in ("num_cores", "core_count", "num_tensorcores"):
            c = getattr(info, name, None)
            if c:
                cores = int(c)
                break
    except Exception:
        pass
    return vmem, cores


def _make_mlp_kernel(n_chunks, hc, use_scratch):
    """Fused fc1 -> GELU -> fc2 body for one (row tile i, hidden tile k) step.

    x / out blocks depend only on i; W1/b1/W2 blocks depend only on k, so when
    the grid has a single k step the weights stay resident in VMEM across all
    row tiles (read from HBM exactly once).
    """

    def kernel(x_ref, w1_ref, b1_ref, w2_ref, b2_ref, o_ref, *scratch):
        acc_ref = scratch[0] if use_scratch else o_ref
        k = pl.program_id(1)

        @pl.when(k == 0)
        def _init():
            acc_ref[...] = jnp.zeros_like(acc_ref)

        x = x_ref[...]
        w2_dtype = w2_ref.dtype

        # Chunk the hidden tile so fc1-matmul / GELU / fc2-matmul of different
        # chunks can overlap (MXU vs VPU/EUP slots) and the (tm, hc) f32
        # intermediate stays small.
        for c in range(n_chunks):
            if n_chunks == 1:
                w1_c = w1_ref[...]
                b1_c = b1_ref[...]
                w2_c = w2_ref[...]
            else:
                sl = pl.ds(c * hc, hc)
                w1_c = w1_ref[:, sl]
                b1_c = b1_ref[:, sl]
                w2_c = w2_ref[sl, :]

            h = jnp.dot(x, w1_c, preferred_element_type=jnp.float32)
            h = h + b1_c.astype(jnp.float32)
            h = _gelu_exact(h)
            # Dropout with p=0.0 is the identity in train and eval.
            # TODO(synk): add stochastic dropout via pltpu.prng_random_bits if drop > 0.
            p = jnp.dot(h.astype(w2_dtype), w2_c,
                        preferred_element_type=jnp.float32)
            acc_ref[...] += p

        @pl.when(k == pl.num_programs(1) - 1)
        def _finalize():
            out = acc_ref[...].astype(jnp.float32) + b2_ref[...].astype(jnp.float32)
            o_ref[...] = out.astype(o_ref.dtype)

    return kernel


def _choose_tiles(M, D, H, O, x_dtype, w_dtype, out_dtype):
    """Pick (tm, th, Hp, hc, use_scratch, vmem_limit, n_cores) for this chip."""
    vmem_bytes, n_cores = _tpu_vmem_and_cores()
    budget = vmem_bytes * 3 // 4      # leave compiler headroom

    x_item = jnp.dtype(x_dtype).itemsize
    w_item = jnp.dtype(w_dtype).itemsize
    out_item = jnp.dtype(out_dtype).itemsize
    sub = _sublane_multiple(x_dtype)
    use_scratch = jnp.dtype(out_dtype) != jnp.dtype(jnp.float32)

    big_vmem = vmem_bytes >= (96 << 20)          # v5e / v6e (128 MiB) vs v7x (64 MiB)
    cand_base = (1024, 512, 256, 128) if big_vmem else (512, 256, 128)

    m_cap = _round_up(M, sub)
    tm_cands = []
    for t in cand_base:
        t = min(m_cap, _round_up(t, sub))
        if t not in tm_cands:
            tm_cands.append(t)

    # Hidden-tile candidates, most preferred first:
    #   (a) full hidden dim resident (weights read from HBM exactly once),
    #   (b) streamed 128-aligned slabs, largest first (fewest k steps);
    #       H is zero-padded up to a multiple of the slab.
    th_cands = [(H, H)]
    for t in cand_base:
        if t < H:
            th_cands.append((t, _round_up(H, t)))

    def est(tm, th, hc):
        b = 2 * tm * D * x_item              # x row tile (double-buffered)
        b += 2 * D * th * w_item             # W1 slab
        b += 2 * th * w_item                 # b1 slab
        b += 2 * th * O * w_item             # W2 slab
        b += 2 * O * w_item                  # b2
        b += 2 * tm * O * out_item           # output row tile
        if use_scratch:
            b += tm * O * 4                  # f32 accumulator scratch
        b += 2 * tm * hc * 4                 # fc1/GELU f32 intermediate (slack)
        return b

    chosen = None
    for th, Hp in th_cands:
        hc = _chunk_width(th)
        for tm in tm_cands:
            if est(tm, th, hc) <= budget:
                chosen = (tm, th, Hp, hc)
                break
        if chosen is not None:
            break
    if chosen is None:
        # Very large D/O: smallest tiles, let Mosaic re-tile / spill.
        th, Hp = th_cands[-1]
        chosen = (tm_cands[-1], th, Hp, _chunk_width(th))

    tm, th, Hp, hc = chosen
    vmem_limit = min(max(vmem_bytes - (8 << 20), 32 << 20),
                     max(est(tm, th, hc) + (8 << 20), 32 << 20))
    return tm, th, Hp, hc, use_scratch, int(vmem_limit), n_cores


def mlp_pallas(x, w1, b1, w2, b2):
    """x: (..., D). w1: (D, H), b1: (H,), w2: (H, O), b2: (O,). Returns (..., O)."""
    orig_shape = x.shape
    D = orig_shape[-1]
    x2 = x.reshape(-1, D)
    M = x2.shape[0]
    H = w1.shape[1]
    O = w2.shape[1]
    out_dtype = x.dtype

    tm, th, Hp, hc, use_scratch, vmem_limit, n_cores = _choose_tiles(
        M, D, H, O, x.dtype, w1.dtype, out_dtype)

    # Megacore: make sure every TensorCore gets at least one "parallel" row tile.
    sub = _sublane_multiple(x.dtype)
    if n_cores >= 2:
        while (_round_up(M, tm) // tm) < n_cores and tm > sub:
            tm = max(sub, _round_up(tm // 2, sub))

    # Pad rows to a full row tile and hidden dim to a full slab (zeros in the
    # padded W1 columns / b1 / W2 rows contribute exactly 0 to the output).
    Mp = _round_up(M, tm)
    if Mp != M:
        x2 = jnp.pad(x2, ((0, Mp - M), (0, 0)))
    if Hp != H:
        w1 = jnp.pad(w1, ((0, 0), (0, Hp - H)))
        b1 = jnp.pad(b1, ((0, Hp - H),))
        w2 = jnp.pad(w2, ((0, Hp - H), (0, 0)))

    nm = Mp // tm
    nk = Hp // th
    n_chunks = th // hc

    x_item = jnp.dtype(x2.dtype).itemsize
    w_item = jnp.dtype(w1.dtype).itemsize
    out_item = jnp.dtype(out_dtype).itemsize
    w_reads = 1 if nk == 1 else nm   # resident weights are read from HBM once
    cost = pl.CostEstimate(
        flops=2 * Mp * (D * Hp + Hp * O),
        transcendentals=Mp * Hp,
        bytes_accessed=int(Mp * D * x_item
                           + w_reads * ((D * Hp + Hp) + (Hp * O + O)) * w_item
                           + Mp * O * out_item),
    )

    kernel = _make_mlp_kernel(n_chunks=n_chunks, hc=hc, use_scratch=use_scratch)
    scratch_shapes = [pltpu.VMEM((tm, O), jnp.float32)] if use_scratch else []

    out = pl.pallas_call(
        kernel,
        out_shape=jax.ShapeDtypeStruct((Mp, O), out_dtype),
        grid_spec=pltpu.PrefetchScalarGridSpec(
            num_scalar_prefetch=0,
            grid=(nm, nk),
            in_specs=[
                pl.BlockSpec((tm, D), lambda i, k: (i, 0)),   # x row tile
                pl.BlockSpec((D, th), lambda i, k: (0, k)),   # W1 hidden slab
                pl.BlockSpec((1, th), lambda i, k: (0, k)),   # b1 hidden slab
                pl.BlockSpec((th, O), lambda i, k: (k, 0)),   # W2 hidden slab
                pl.BlockSpec((1, O), lambda i, k: (0, 0)),    # b2 (constant)
            ],
            out_specs=pl.BlockSpec((tm, O), lambda i, k: (i, 0)),
            scratch_shapes=scratch_shapes,
        ),
        compiler_params=pltpu.CompilerParams(
            dimension_semantics=("parallel", "arbitrary"),
            vmem_limit_bytes=vmem_limit,
        ),
        cost_estimate=cost,
    )(x2, w1, b1.reshape(1, Hp), w2, b2.reshape(1, O))

    out = out[:M] if Mp != M else out
    return out.reshape(*orig_shape[:-1], O)


def mlp_reference(x, w1, b1, w2, b2):
    h = x @ w1 + b1
    h = _gelu_exact(h)
    return h @ w2 + b2


if __name__ == "__main__":
    # Module config (synthetic, deterministic init — no checkpoint load).
    batch, seq = 2, 8
    in_features, hidden_features, out_features = 32, 64, 32

    key = jax.random.PRNGKey(0)
    kx, k1, kb1, k2, kb2 = jax.random.split(key, 5)

    # Input: (B, N, D) token-sequence layout.
    x = jax.random.normal(kx, (batch, seq, in_features), dtype=jnp.float32)

    # Deterministic params (stored (in, out) — transpose of torch Linear.weight).
    bound1 = 1.0 / math.sqrt(in_features)
    w1 = jax.random.uniform(k1, (in_features, hidden_features),
                            minval=-bound1, maxval=bound1, dtype=jnp.float32)
    b1 = jax.random.uniform(kb1, (hidden_features,),
                            minval=-bound1, maxval=bound1, dtype=jnp.float32)
    bound2 = 1.0 / math.sqrt(hidden_features)
    w2 = jax.random.uniform(k2, (hidden_features, out_features),
                            minval=-bound2, maxval=bound2, dtype=jnp.float32)
    b2 = jax.random.uniform(kb2, (out_features,),
                            minval=-bound2, maxval=bound2, dtype=jnp.float32)

    out = mlp_pallas(x, w1, b1, w2, b2)
    out = jax.block_until_ready(out)

    ref = mlp_reference(x.reshape(batch * seq, in_features), w1, b1, w2, b2)
    ref = ref.reshape(batch, seq, out_features)
    assert out.shape == (batch, seq, out_features)
    assert jnp.allclose(out, ref, atol=1e-5, rtol=1e-5), "mismatch vs reference"

    print("KERNEL_OK")
</pallas_src>

<mosaic_0001>
module attributes {stable_mosaic.version = 11 : i64} {
  func.func @kernel(%arg0: i32, %arg1: i32, %arg2: memref<16x32xf32, #tpu.memory_space<vmem>>, %arg3: memref<32x64xf32, #tpu.memory_space<vmem>>, %arg4: memref<1x64xf32, #tpu.memory_space<vmem>>, %arg5: memref<64x32xf32, #tpu.memory_space<vmem>>, %arg6: memref<1x32xf32, #tpu.memory_space<vmem>>, %arg7: memref<16x32xf32, #tpu.memory_space<vmem>>) attributes {dimension_semantics = [#tpu.dimension_semantics<parallel>, #tpu.dimension_semantics<arbitrary>], iteration_bounds = array<i64: 1, 1>, scalar_prefetch = 0 : i64, scratch_operands = 0 : i64, tpu.core_type = #tpu.core_type<tc>, window_params = [{transform_indices = @transform_0, window_bounds = array<i64: 16, 32>}, {transform_indices = @transform_1, window_bounds = array<i64: 32, 64>}, {transform_indices = @transform_2, window_bounds = array<i64: 1, 64>}, {transform_indices = @transform_3, window_bounds = array<i64: 64, 32>}, {pipeline_mode = #tpu.pipeline_mode<synchronous>, transform_indices = @transform_4, window_bounds = array<i64: 1, 32>}, {transform_indices = @transform_5, window_bounds = array<i64: 16, 32>}]} {
    %c0_i32 = arith.constant 0 : i32
    %0 = arith.cmpi eq, %arg1, %c0_i32 : i32
    %1 = arith.extui %0 : i1 to i32
    %c0_i32_0 = arith.constant 0 : i32
    %2 = arith.cmpi ne, %1, %c0_i32_0 : i32
    scf.if %2 {
      %cst_18 = arith.constant 0.000000e+00 : f32
      %25 = vector.broadcast %cst_18 : f32 to vector<16x32xf32>
      %c0_19 = arith.constant 0 : index
      %c0_20 = arith.constant 0 : index
      %26 = vector.load %arg7[%c0_19, %c0_20] : memref<16x32xf32, #tpu.memory_space<vmem>>, vector<16x32xf32>
      tpu.vector_store %arg7[%c0_19, %c0_20], %25 {strides = array<i32>} : memref<16x32xf32, #tpu.memory_space<vmem>>, vector<16x32xf32>,
    } else {
    }
    %c0 = arith.constant 0 : index
    %c0_1 = arith.constant 0 : index
    %3 = vector.load %arg2[%c0, %c0_1] : memref<16x32xf32, #tpu.memory_space<vmem>>, vector<16x32xf32>
    %c0_2 = arith.constant 0 : index
    %c0_3 = arith.constant 0 : index
    %4 = vector.load %arg3[%c0_2, %c0_3] : memref<32x64xf32, #tpu.memory_space<vmem>>, vector<32x64xf32>
    %c0_4 = arith.constant 0 : index
    %c0_5 = arith.constant 0 : index
    %5 = vector.load %arg4[%c0_4, %c0_5] : memref<1x64xf32, #tpu.memory_space<vmem>>, vector<1x64xf32>
    %c0_6 = arith.constant 0 : index
    %c0_7 = arith.constant 0 : index
    %6 = vector.load %arg5[%c0_6, %c0_7] : memref<64x32xf32, #tpu.memory_space<vmem>>, vector<64x32xf32>
    %cst = arith.constant dense<0.000000e+00> : vector<16x64xf32>
    %7 = tpu.matmul %3, %4, %cst {dimension_numbers = #tpu.dot_dimension_numbers<[1], [0], [0], [1], [0, 0, 1, 1], [], []>} : vector<16x32xf32>, vector<32x64xf32>, vector<16x64xf32> -> vector<16x64xf32>
    %8 = vector.broadcast %5 : vector<1x64xf32> to vector<16x64xf32>
    %9 = arith.addf %7, %8 : vector<16x64xf32>
    %cst_8 = arith.constant 5.000000e-01 : f32
    %10 = vector.broadcast %cst_8 : f32 to vector<16x64xf32>
    %11 = arith.mulf %10, %9 : vector<16x64xf32>
    %cst_9 = arith.constant 0.707106769 : f32
    %12 = vector.broadcast %cst_9 : f32 to vector<16x64xf32>
    %13 = arith.mulf %9, %12 : vector<16x64xf32>
    %14 = math.erf %13 : vector<16x64xf32>
    %cst_10 = arith.constant 1.000000e+00 : f32
    %15 = vector.broadcast %cst_10 : f32 to vector<16x64xf32>
    %16 = arith.addf %15, %14 : vector<16x64xf32>
    %17 = arith.mulf %11, %16 : vector<16x64xf32>
    %cst_11 = arith.constant dense<0.000000e+00> : vector<16x32xf32>
    %18 = tpu.matmul %17, %6, %cst_11 {dimension_numbers = #tpu.dot_dimension_numbers<[1], [0], [0], [1], [0, 0, 1, 1], [], []>} : vector<16x64xf32>, vector<64x32xf32>, vector<16x32xf32> -> vector<16x32xf32>
    %c0_12 = arith.constant 0 : index
    %c0_13 = arith.constant 0 : index
    %19 = vector.load %arg7[%c0_12, %c0_13] : memref<16x32xf32, #tpu.memory_space<vmem>>, vector<16x32xf32>
    %20 = arith.addf %19, %18 : vector<16x32xf32>
    %c0_14 = arith.constant 0 : index
    %c0_15 = arith.constant 0 : index
    %21 = vector.load %arg7[%c0_14, %c0_15] : memref<16x32xf32, #tpu.memory_space<vmem>>, vector<16x32xf32>
    tpu.vector_store %arg7[%c0_14, %c0_15], %20 {strides = array<i32>} : memref<16x32xf32, #tpu.memory_space<vmem>>, vector<16x32xf32>,
    %c0_i32_16 = arith.constant 0 : i32
    %22 = arith.cmpi eq, %arg1, %c0_i32_16 : i32
    %23 = arith.extui %22 : i1 to i32
    %c0_i32_17 = arith.constant 0 : i32
    %24 = arith.cmpi ne, %23, %c0_i32_17 : i32
    scf.if %24 {
      %c0_18 = arith.constant 0 : index
      %c0_19 = arith.constant 0 : index
      %25 = vector.load %arg7[%c0_18, %c0_19] : memref<16x32xf32, #tpu.memory_space<vmem>>, vector<16x32xf32>
      %c0_20 = arith.constant 0 : index
      %c0_21 = arith.constant 0 : index
      %26 = vector.load %arg6[%c0_20, %c0_21] : memref<1x32xf32, #tpu.memory_space<vmem>>, vector<1x32xf32>
      %27 = vector.broadcast %26 : vector<1x32xf32> to vector<16x32xf32>
      %28 = arith.addf %25, %27 : vector<16x32xf32>
      %c0_22 = arith.constant 0 : index
      %c0_23 = arith.constant 0 : index
      %29 = vector.load %arg7[%c0_22, %c0_23] : memref<16x32xf32, #tpu.memory_space<vmem>>, vector<16x32xf32>
      tpu.vector_store %arg7[%c0_22, %c0_23], %28 {strides = array<i32>} : memref<16x32xf32, #tpu.memory_space<vmem>>, vector<16x32xf32>,
    } else {
    }
    return
  }
  func.func @transform_0(%arg0: i32, %arg1: i32) -> (i32, i32) {
    %c0_i32 = arith.constant 0 : i32
    %c0_i32_0 = arith.constant 0 : i32
    return %arg0, %c0_i32 : i32, i32
  }
  func.func @transform_1(%arg0: i32, %arg1: i32) -> (i32, i32) {
    %c0_i32 = arith.constant 0 : i32
    %c0_i32_0 = arith.constant 0 : i32
    return %c0_i32, %arg1 : i32, i32
  }
  func.func @transform_2(%arg0: i32, %arg1: i32) -> (i32, i32) {
    %c0_i32 = arith.constant 0 : i32
    %c0_i32_0 = arith.constant 0 : i32
    return %c0_i32, %arg1 : i32, i32
  }
  func.func @transform_3(%arg0: i32, %arg1: i32) -> (i32, i32) {
    %c0_i32 = arith.constant 0 : i32
    %c0_i32_0 = arith.constant 0 : i32
    return %arg1, %c0_i32 : i32, i32
  }
  func.func @transform_4(%arg0: i32, %arg1: i32) -> (i32, i32) {
    %c0_i32 = arith.constant 0 : i32
    %c0_i32_0 = arith.constant 0 : i32
    %c0_i32_1 = arith.constant 0 : i32
    return %c0_i32, %c0_i32_0 : i32, i32
  }
  func.func @transform_5(%arg0: i32, %arg1: i32) -> (i32, i32) {
    %c0_i32 = arith.constant 0 : i32
    %c0_i32_0 = arith.constant 0 : i32
    return %arg0, %c0_i32 : i32, i32
  }
}

</mosaic_0001>

<llo_original>
// kernel: tpu_custom_call.1
$region0: #{tpu_custom_call.1}
  #allocation0 [shape = 'u32[]', space=smem, size = 0x4, offset = 0x4, fixed_abs, tag = 'smem constant byte address 0x4 - core index']
  #allocation1 [shape = 'u32[144,128]{1,0:T(1,128)}', space=vmem, size = 0x12000, scoped, tag = 'internal scratch']
  %s0 = inlined_call_operand.vmem [shape: f32[16,32], index: 0, kind: input, shape index: {}]
  %s1 = inlined_call_operand.vmem [shape: f32[32,64], index: 1, kind: input, shape index: {}]
  %s2 = inlined_call_operand.vmem [shape: f32[1,64], index: 2, kind: input, shape index: {}]
  %s3 = inlined_call_operand.vmem [shape: f32[64,32], index: 3, kind: input, shape index: {}]
  %s4 = inlined_call_operand.vmem [shape: f32[1,32], index: 4, kind: input, shape index: {}]
  %s5 = inlined_call_operand.hbm [shape: f32[16,32], index: 5, kind: output, shape index: {}]
  %s6 = sld [smem:[#allocation0]]
  $region38: #{tpu_custom_call.1} parent=0
    _
  %s8 = ssub.s32 1, %s6
  %s9 = scalar_select 0, %s8, %s6
  $region1: #{tpu_custom_call.1} parent=0
    #allocation2 [shape = 'u8[8192]{0}', space=vmem, size = 0x2000, scoped, tag = 'output window, operand 0, single buffered']
    #allocation3 [shape = 's32[1]{0}', space=sflag, size = 0x4, scoped, tag = 'scoped memory for tpu_custom_call.1']
    %10 = vsyncpa [#allocation3], 0
    // Predicated region
    $region2: #{tpu_custom_call.1} parent=1 // pred_check
      _
    $region3: #{tpu_custom_call.1} parent=1 // pred_check_branch
      %12 = sbr.rel (0) target = $region5
    $region4: #{tpu_custom_call.1} parent=1 // pred_region
      _
    $region5: #{tpu_custom_call.1} parent=1 // pred_fallthru
      _
    // Predicated region
    $region6: #{tpu_custom_call.1} parent=1 // pred_check
      _
    $region7: #{tpu_custom_call.1} parent=1 // pred_check_branch
      %14 = sbr.rel (0) target = $region9
    $region8: #{tpu_custom_call.1} parent=1 // pred_region
      _
    $region9: #{tpu_custom_call.1} parent=1 // pred_fallthru
      _
    // Predicated region
    $region10: #{tpu_custom_call.1} parent=1 // pred_check
      _
    $region11: #{tpu_custom_call.1} parent=1 // pred_check_branch
      %16 = sbr.rel (0) target = $region13
    $region12: #{tpu_custom_call.1} parent=1 // pred_region
      _
    $region13: #{tpu_custom_call.1} parent=1 // pred_fallthru
      _
    // Predicated region
    $region14: #{tpu_custom_call.1} parent=1 // pred_check
      _
    $region15: #{tpu_custom_call.1} parent=1 // pred_check_branch
      %18 = sbr.rel (0) target = $region17
    $region16: #{tpu_custom_call.1} parent=1 // pred_region
      _
    $region17: #{tpu_custom_call.1} parent=1 // pred_fallthru
      _
    // Predicated region
    $region18: #{tpu_custom_call.1} parent=1 // pred_check
      _
    $region19: #{tpu_custom_call.1} parent=1 // pred_check_branch
      %20 = sbr.rel (0) target = $region21
    $region20: #{tpu_custom_call.1} parent=1 // pred_region
      _
    $region21: #{tpu_custom_call.1} parent=1 // pred_fallthru
      _
    %p21 = scmp.eq.s32.totalorder 0, 0
    // Predicated region
    $region22: #{tpu_custom_call.1} parent=1 // pred_check
      %p22 = pneg %p21
    $region23: #{tpu_custom_call.1} parent=1 // pred_check_branch
      %24 = sbr.rel (%p22) target = $region25
    $region24: #{tpu_custom_call.1} parent=1 // pred_region
      %vm25 = vcmask 261120
      %26 = vst.msk [vmem:[#allocation2] sm:$0xff] %vm25, 0.0
      %27 = vst.msk [vmem:[#allocation2 + $0x8] sm:$0xff] %vm25, 0.0
    $region25: #{tpu_custom_call.1} parent=1 // pred_fallthru
      _
    %v28 = vld [vmem:[%s0] sm:$0xff]
    %v29 = vld [vmem:[%s0 + $0x8] sm:$0xff]
    %v30 = vld [vmem:[%s1] sm:$0xff]
    %v31 = vld [vmem:[%s1 + $0x8] sm:$0xff]
    %v32 = vld [vmem:[%s1 + $0x10] sm:$0xff]
    %v33 = vld [vmem:[%s1 + $0x18] sm:$0xff]
    %v34 = vld [vmem:[%s2] sm:$0x1]
    %v35 = vld [vmem:[%s3] sm:$0xff]
    %v36 = vld [vmem:[%s3 + $0x8] sm:$0xff]
    %v37 = vld [vmem:[%s3 + $0x10] sm:$0xff]
    %v38 = vld [vmem:[%s3 + $0x18] sm:$0xff]
    %v39 = vld [vmem:[%s3 + $0x20] sm:$0xff]
    %v40 = vld [vmem:[%s3 + $0x28] sm:$0xff]
    %v41 = vld [vmem:[%s3 + $0x30] sm:$0xff]
    %v42 = vld [vmem:[%s3 + $0x38] sm:$0xff]
    %v44 = vlaneseq
    %v45 = vshrl.u32 %v44, 7
    %v46 = vsub.s32 0, %v45
    %v47 = vrot.slane %v34, %v46
    %vm49 = vcmask 261120
    %v51 = vsel %vm49, %v28, 0
    %v54 = vsel %vm49, %v29, 0
    %56 = vmatprep.subr.mxu0 0.0
    %57 = vmatpush1.msra.mxu0 %v30
    %58 = vmatprep.subr.mxu0 0.0
    %59 = vmatpush1.msra.mxu0 %v31
    %60 = vmatprep.subr.mxu0 0.0
    %61 = vmatpush1.msra.mxu0 %v32
    %62 = vmatprep.subr.mxu0 0.0
    %63 = vmatpush1.msra.mxu0 %v33
    %64 = vmatprep.subr.mxu0 0.0
    %65 = vmatpush1.msra.mxu0 0.0
    %66 = vmatprep.subr.mxu0 0.0
    %67 = vmatpush1.msra.mxu0 0.0
    %68 = vmatprep.subr.mxu0 0.0
    %69 = vmatpush1.msra.mxu0 0.0
    %70 = vmatprep.subr.mxu0 0.0
    %71 = vmatpush1.msra.mxu0 0.0
    %72 = vmatprep.subr.mxu0 0.0
    %73 = vmatpush1.msra.mxu0 0.0
    %74 = vmatprep.subr.mxu0 0.0
    %75 = vmatpush1.msra.mxu0 0.0
    %76 = vmatprep.subr.mxu0 0.0
    %77 = vmatpush1.msra.mxu0 0.0
    %78 = vmatprep.subr.mxu0 0.0
    %79 = vmatpush1.msra.mxu0 0.0
    %80 = vmatprep.subr.mxu0 0.0
    %81 = vmatpush1.msra.mxu0 0.0
    %82 = vmatprep.subr.mxu0 0.0
    %83 = vmatpush1.msra.mxu0 0.0
    %84 = vmatprep.subr.mxu0 0.0
    %85 = vmatpush1.msra.mxu0 0.0
    %86 = vmatprep.subr.mxu0 0.0
    %87 = vmatpush1.msra.mxu0 0.0
    %88 = vmatprep.subr.mxu0 0.0
    %89 = vmatpush1.msra.mxu0 0.0
    %90 = vmatprep.subr.mxu0 0.0
    %91 = vmatpush1.msra.mxu0 0.0
    %92 = vmatprep.subr.mxu0 0.0
    %93 = vmatpush1.msra.mxu0 0.0
    %94 = vmatprep.subr.mxu0 0.0
    %95 = vmatpush1.msra.mxu0 0.0
    %96 = vmatprep.subr.mxu0 0.0
    %97 = vmatpush1.msra.mxu0 0.0
    %98 = vmatprep.subr.mxu0 0.0
    %99 = vmatpush1.msra.mxu0 0.0
    %100 = vmatprep.subr.mxu0 0.0
    %101 = vmatpush1.msra.mxu0 0.0
    %102 = vmatprep.subr.mxu0 0.0
    %103 = vmatpush1.msra.mxu0 0.0
    %104 = vmatprep.subr.mxu0 0.0
    %105 = vmatpush1.msra.mxu0 0.0
    %106 = vmatprep.subr.mxu0 0.0
    %107 = vmatpush1.msra.mxu0 0.0
    %108 = vmatprep.subr.mxu0 0.0
    %109 = vmatpush1.msra.mxu0 0.0
    %110 = vmatprep.subr.mxu0 0.0
    %111 = vmatpush1.msra.mxu0 0.0
    %112 = vmatprep.subr.mxu0 0.0
    %113 = vmatpush1.msra.mxu0 0.0
    %114 = vmatprep.subr.mxu0 0.0
    %115 = vmatpush1.msra.mxu0 0.0
    %116 = vmatprep.subr.mxu0 0.0
    %117 = vmatpush1.msra.mxu0 0.0
    %118 = vmatprep.subr.mxu0 0.0
    %119 = vmatpush1.msra.mxu0 0.0
    %120 = vmatprep.mubr.f32.mxu0 0.0
    %121 = vmatmul.mubr.f32.gmra.mrb[0].mxu0 %v51
    %v122 = vpop.f32.mrb[0].mxu0
    %v123 = vadd.f32 %v47, %v122
    %v124 = vpop.f32.mrb[0].mxu0
    %125 = vmatprep.mubr.f32.mxu0 0.0
    %126 = vmatmul.mubr.f32.gmra.mrb[0].mxu0 %v54
    %v127 = vpop.f32.mrb[0].mxu0
    %v128 = vadd.f32 %v47, %v127
    %v129 = vpop.f32.mrb[0].mxu0
    %130 = vdwg.mxu0
    %v131 = vmul.f32 %v123, 0.5
    %v132 = vmul.f32 %v128, 0.5
    %v133 = vmul.f32 %v123, 0.70710677
    %v134 = vmul.f32 %v128, 0.70710677
    %v135 = verf.f32.pop %v133
    %v136 = verf.f32.pop %v134
    %v137 = vadd.f32 %v135, 1.0
    %v138 = vadd.f32 %v136, 1.0
    %v139 = vmul.f32 %v131, %v137
    %v140 = vmul.f32 %v132, %v138
    %vm141 = vcmask 523264
    %v143 = vsel %vm141, %v139, 0
    %v146 = vsel %vm141, %v140, 0
    %148 = vmatprep.subr.mxu0 0.0
    %149 = vmatpush1.msra.mxu0 %v35
    %150 = vmatprep.subr.mxu0 0.0
    %151 = vmatpush1.msra.mxu0 %v36
    %152 = vmatprep.subr.mxu0 0.0
    %153 = vmatpush1.msra.mxu0 %v37
    %154 = vmatprep.subr.mxu0 0.0
    %155 = vmatpush1.msra.mxu0 %v38
    %156 = vmatprep.subr.mxu0 0.0
    %157 = vmatpush1.msra.mxu0 %v39
    %158 = vmatprep.subr.mxu0 0.0
    %159 = vmatpush1.msra.mxu0 %v40
    %160 = vmatprep.subr.mxu0 0.0
    %161 = vmatpush1.msra.mxu0 %v41
    %162 = vmatprep.subr.mxu0 0.0
    %163 = vmatpush1.msra.mxu0 %v42
    %164 = vmatprep.subr.mxu0 0.0
    %165 = vmatpush1.msra.mxu0 0.0
    %166 = vmatprep.subr.mxu0 0.0
    %167 = vmatpush1.msra.mxu0 0.0
    %168 = vmatprep.subr.mxu0 0.0
    %169 = vmatpush1.msra.mxu0 0.0
    %170 = vmatprep.subr.mxu0 0.0
    %171 = vmatpush1.msra.mxu0 0.0
    %172 = vmatprep.subr.mxu0 0.0
    %173 = vmatpush1.msra.mxu0 0.0
    %174 = vmatprep.subr.mxu0 0.0
    %175 = vmatpush1.msra.mxu0 0.0
    %176 = vmatprep.subr.mxu0 0.0
    %177 = vmatpush1.msra.mxu0 0.0
    %178 = vmatprep.subr.mxu0 0.0
    %179 = vmatpush1.msra.mxu0 0.0
    %180 = vmatprep.subr.mxu0 0.0
    %181 = vmatpush1.msra.mxu0 0.0
    %182 = vmatprep.subr.mxu0 0.0
    %183 = vmatpush1.msra.mxu0 0.0
    %184 = vmatprep.subr.mxu0 0.0
    %185 = vmatpush1.msra.mxu0 0.0
    %186 = vmatprep.subr.mxu0 0.0
    %187 = vmatpush1.msra.mxu0 0.0
    %188 = vmatprep.subr.mxu0 0.0
    %189 = vmatpush1.msra.mxu0 0.0
    %190 = vmatprep.subr.mxu0 0.0
    %191 = vmatpush1.msra.mxu0 0.0
    %192 = vmatprep.subr.mxu0 0.0
    %193 = vmatpush1.msra.mxu0 0.0
    %194 = vmatprep.subr.mxu0 0.0
    %195 = vmatpush1.msra.mxu0 0.0
    %196 = vmatprep.subr.mxu0 0.0
    %197 = vmatpush1.msra.mxu0 0.0
    %198 = vmatprep.subr.mxu0 0.0
    %199 = vmatpush1.msra.mxu0 0.0
    %200 = vmatprep.subr.mxu0 0.0
    %201 = vmatpush1.msra.mxu0 0.0
    %202 = vmatprep.subr.mxu0 0.0
    %203 = vmatpush1.msra.mxu0 0.0
    %204 = vmatprep.subr.mxu0 0.0
    %205 = vmatpush1.msra.mxu0 0.0
    %206 = vmatprep.subr.mxu0 0.0
    %207 = vmatpush1.msra.mxu0 0.0
    %208 = vmatprep.subr.mxu0 0.0
    %209 = vmatpush1.msra.mxu0 0.0
    %210 = vmatprep.subr.mxu0 0.0
    %211 = vmatpush1.msra.mxu0 0.0
    %212 = vmatprep.mubr.f32.mxu0 0.0
    %213 = vmatmul.mubr.f32.gmra.mrb[0].mxu0 %v143
    %v214 = vpop.f32.mrb[0].mxu0
    %v215 = vadd.f32 0.0, %v214
    %v216 = vpop.f32.mrb[0].mxu0
    %217 = vmatprep.mubr.f32.mxu0 0.0
    %218 = vmatmul.mubr.f32.gmra.mrb[0].mxu0 %v146
    %v219 = vpop.f32.mrb[0].mxu0
    %v220 = vadd.f32 0.0, %v219
    %v221 = vpop.f32.mrb[0].mxu0
    %222 = vdwg.mxu0
    %v223 = vld [vmem:[#allocation2] sm:$0xff]
    %v224 = vld [vmem:[#allocation2 + $0x8] sm:$0xff]
    %v225 = vadd.f32 %v223, %v215
    %v226 = vadd.f32 %v224, %v220
    %227 = vst.msk [vmem:[#allocation2] sm:$0xff] %vm49, %v225
    %228 = vst.msk [vmem:[#allocation2 + $0x8] sm:$0xff] %vm49, %v226
    // Predicated region
    $region26: #{tpu_custom_call.1} parent=1 // pred_check
      %p229 = pneg %p21
    $region27: #{tpu_custom_call.1} parent=1 // pred_check_branch
      %231 = sbr.rel (%p229) target = $region29
    $region28: #{tpu_custom_call.1} parent=1 // pred_region
      %v232 = vld [vmem:[#allocation2] sm:$0xff]
      %v233 = vld [vmem:[#allocation2 + $0x8] sm:$0xff]
      %v234 = vld [vmem:[%s4] sm:$0x1]
      %v236 = vlaneseq
      %v237 = vshrl.u32 %v236, 7
      %v238 = vsub.s32 0, %v237
      %v239 = vrot.slane %v234, %v238
      %v241 = vadd.f32 %v232, %v239
      %v242 = vadd.f32 %v233, %v239
      %243 = vst.msk [vmem:[#allocation2] sm:$0xff] %vm49, %v241
      %244 = vst.msk [vmem:[#allocation2 + $0x8] sm:$0xff] %vm49, %v242
    $region29: #{tpu_custom_call.1} parent=1 // pred_fallthru
      _
    // Predicated region
    $region30: #{tpu_custom_call.1} parent=1 // pred_check
      _
    $region31: #{tpu_custom_call.1} parent=1 // pred_check_branch
      %246 = sbr.rel (0) target = $region33
    $region32: #{tpu_custom_call.1} parent=1 // pred_region
      %s248 = ssub.s32 256, 256
      %249 = vsyncadd [#allocation3], %s248
      %s250 = sshll.u32 [#allocation2], 4
      %s251 = int_to_ptr.vmem [resolvable:$true] %s250
      %256 = dma.vmem_to_hbm [thread:$0]  %s251, 256, %s5, [#allocation3], 128, 128, 8
    $region33: #{tpu_custom_call.1} parent=1 // pred_fallthru
      _
    // Predicated region
    $region34: #{tpu_custom_call.1} parent=1 // pred_check
      _
    $region35: #{tpu_custom_call.1} parent=1 // pred_check_branch
      %258 = sbr.rel (0) target = $region37
    $region36: #{tpu_custom_call.1} parent=1 // pred_region
      %259 = dma.done [#allocation3], 256
    $region37: #{tpu_custom_call.1} parent=1 // pred_fallthru
      _
    %260 = vsyncpa [#allocation3], 1

</llo_original>
